<compile_context>
chip_gen: v7x
topology: tpu7x:2x2x1
jax: 0.10.0
libtpu: 0.0.40
codegen_flags: <defaults>
</compile_context>

<pallas_src>
import functools

import jax
import jax.numpy as jnp
from jax.experimental import pallas as pl
from jax.experimental.pallas import tpu as pltpu


def mlp_kernel(x_ref, w1_ref, b1_ref, w2_ref, b2_ref, w3_ref, b3_ref, o_ref):
    # Layer 1: Linear + ReLU (MXU matmul, f32 accumulation, f32 epilogue).
    h1 = jnp.dot(x_ref[...], w1_ref[...], preferred_element_type=jnp.float32)
    h1 = jnp.maximum(h1 + b1_ref[...], 0.0)
    # Layer 2: Linear + ReLU.
    h2 = jnp.dot(h1.astype(w2_ref.dtype), w2_ref[...],
                 preferred_element_type=jnp.float32)
    h2 = jnp.maximum(h2 + b2_ref[...], 0.0)
    # Layer 3: Linear.  W3 is lane-padded to 128 for the MXU; slice the real
    # output columns *before* the store so only `output_size` columns hit HBM.
    out_full = jnp.dot(h2.astype(w3_ref.dtype), w3_ref[...],
                       preferred_element_type=jnp.float32)
    n_out = o_ref.shape[-1]
    o_ref[...] = (out_full[:, :n_out] + b3_ref[...]).astype(o_ref.dtype)


def _round_up(n, m):
    return ((n + m - 1) // m) * m


def _choose_tile(batch, tile_b, sublane):
    """Sublane-aligned batch tile <= tile_b.  Prefer >= 2 grid steps for
    medium/large batches so both v7x TensorCores engage."""
    tile_b = max(sublane, (tile_b // sublane) * sublane)
    if batch <= 2 * sublane:                      # tiny batch: one aligned tile
        return sublane
    return min(tile_b, _round_up(pl.cdiv(batch, 2), sublane))


@functools.partial(jax.jit, static_argnames=("tile_b",))
def simple_network_forward(x, params, *, tile_b=4096):
    """x: (B, input_size).  params: dict w1,b1,w2,b2,w3,b3 (f32 or bf16 weights)."""
    w1, b1, w2, b2, w3, b3 = (params["w1"], params["b1"], params["w2"],
                              params["b2"], params["w3"], params["b3"])
    B, in_size = x.shape
    hidden = w1.shape[1]
    out_size = w3.shape[1]
    compute_dtype = w1.dtype
    sublane = 16 if compute_dtype == jnp.bfloat16 else 8   # min tile sublanes

    # Match x to the weight dtype (callers should pass it already matched to
    # avoid this extra pass over x; the bf16 demo below does exactly that).
    if x.dtype != compute_dtype:
        x = x.astype(compute_dtype)

    # Lane-pad W3 to a multiple of 128 for the MXU; the kernel slices the real
    # columns back out before the HBM store, so the output stays (B, out_size).
    n_pad = _round_up(max(out_size, 128), 128)
    w3p = jnp.pad(w3, ((0, 0), (0, n_pad - out_size))) if n_pad != out_size else w3

    # Only pad the batch when it is smaller than one sublane group; otherwise
    # let Pallas mask the ragged last block (no full-array copy of x).
    if B < sublane:
        x_in = jnp.pad(x, ((0, sublane - B), (0, 0)))
        b_grid = sublane
    else:
        x_in, b_grid = x, B

    tb = _choose_tile(b_grid, tile_b, sublane)
    num_tiles = pl.cdiv(b_grid, tb)

    def resident(arr):  # weights/biases: constant block index across the grid
        return pl.BlockSpec(arr.shape, lambda i, _nd=arr.ndim: (0,) * _nd)

    flops = 2 * b_grid * (in_size * hidden + hidden * hidden + hidden * n_pad)
    bytes_accessed = (
        x_in.size * x_in.dtype.itemsize
        + sum(a.size * a.dtype.itemsize for a in (w1, b1, w2, b2, w3p, b3))
        + b_grid * out_size * 4)

    out = pl.pallas_call(
        mlp_kernel,
        out_shape=jax.ShapeDtypeStruct((b_grid, out_size), jnp.float32),
        grid=(num_tiles,),
        in_specs=[
            pl.BlockSpec((tb, in_size), lambda i: (i, 0)),   # streamed x tile
            resident(w1), resident(b1),
            resident(w2), resident(b2),
            resident(w3p), resident(b3),
        ],
        out_specs=pl.BlockSpec((tb, out_size), lambda i: (i, 0)),
        compiler_params=pltpu.CompilerParams(
            dimension_semantics=("parallel",)),
        cost_estimate=pl.CostEstimate(flops=flops, transcendentals=0,
                                      bytes_accessed=bytes_accessed),
    )(x_in, w1, b1, w2, b2, w3p, b3)

    return out if b_grid == B else out[:B]


def init_params(key, input_size, hidden_size, output_size, dtype=jnp.float32):
    """nn.Linear-style U(-1/sqrt(fan_in), +1/sqrt(fan_in)) init, weights stored
    (in, out).  Pass dtype=jnp.bfloat16 to cast weights ONCE for the bf16
    MXU path (biases stay f32; the kernel epilogue is f32)."""
    ks = jax.random.split(key, 6)

    def lin(kw, kb, fan_in, fan_out):
        bound = 1.0 / jnp.sqrt(jnp.float32(fan_in))
        w = jax.random.uniform(kw, (fan_in, fan_out), jnp.float32, -bound, bound)
        b = jax.random.uniform(kb, (1, fan_out), jnp.float32, -bound, bound)
        return w.astype(dtype), b

    w1, b1 = lin(ks[0], ks[1], input_size, hidden_size)
    w2, b2 = lin(ks[2], ks[3], hidden_size, hidden_size)
    w3, b3 = lin(ks[4], ks[5], hidden_size, output_size)
    return {"w1": w1, "b1": b1, "w2": w2, "b2": b2, "w3": w3, "b3": b3}


if __name__ == "__main__":
    input_size, hidden_size, output_size = 32, 128, 16
    batch = 8

    key = jax.random.PRNGKey(0)
    k_params, k_x = jax.random.split(key)
    params = init_params(k_params, input_size, hidden_size, output_size)
    x = jax.random.normal(k_x, (batch, input_size), jnp.float32)

    def ref(xv, p, precision):
        h1 = jnp.maximum(jnp.dot(xv, p["w1"].astype(jnp.float32),
                                 precision=precision) + p["b1"], 0.0)
        h2 = jnp.maximum(jnp.dot(h1, p["w2"].astype(jnp.float32),
                                 precision=precision) + p["b2"], 0.0)
        return jnp.dot(h2, p["w3"].astype(jnp.float32),
                       precision=precision) + p["b3"]

    def close_to_ref(out_v, xv, p, tol):
        # f32 matmuls may lower to either full-f32 multi-pass or bf16-input MXU
        # passes depending on backend defaults; accept either reference.
        hi = ref(xv, p, jax.lax.Precision.HIGHEST)
        lo = ref(xv, p, jax.lax.Precision.DEFAULT)
        return bool(jnp.allclose(out_v, hi, atol=tol, rtol=tol)
                    or jnp.allclose(out_v, lo, atol=tol, rtol=tol))

    # --- small batch, single tile, f32 ---
    out = jax.block_until_ready(simple_network_forward(x, params))
    assert out.shape == (batch, output_size)
    assert close_to_ref(out, x, params, 1e-4)

    # --- multi-tile + ragged batch path (grid >= 2, no wrapper-side pad) ---
    x_big = jax.random.normal(jax.random.PRNGKey(1), (515, input_size), jnp.float32)
    out_big = jax.block_until_ready(simple_network_forward(x_big, params))
    assert out_big.shape == (515, output_size)
    assert close_to_ref(out_big, x_big, params, 1e-4)

    # --- bf16 MXU operands (v6e/v7x fast path): weights cast once at init,
    #     x passed bf16 by the caller, f32 accumulation/epilogue in-kernel ---
    params_bf16 = init_params(k_params, input_size, hidden_size, output_size,
                              dtype=jnp.bfloat16)
    x_b = jax.random.normal(jax.random.PRNGKey(2), (512, input_size), jnp.float32)
    out_b = jax.block_until_ready(
        simple_network_forward(x_b.astype(jnp.bfloat16), params_bf16))
    assert out_b.shape == (512, output_size)
    assert bool(jnp.allclose(out_b, ref(x_b, params, jax.lax.Precision.HIGHEST),
                             atol=5e-2, rtol=5e-2))

    print("KERNEL_OK")
</pallas_src>

<mosaic_0001>
module attributes {stable_mosaic.version = 11 : i64} {
  func.func @mlp_kernel(%arg0: i32, %arg1: memref<8x32xf32, #tpu.memory_space<vmem>>, %arg2: memref<32x128xf32, #tpu.memory_space<vmem>>, %arg3: memref<1x128xf32, #tpu.memory_space<vmem>>, %arg4: memref<128x128xf32, #tpu.memory_space<vmem>>, %arg5: memref<1x128xf32, #tpu.memory_space<vmem>>, %arg6: memref<128x128xf32, #tpu.memory_space<vmem>>, %arg7: memref<1x16xf32, #tpu.memory_space<vmem>>, %arg8: memref<8x16xf32, #tpu.memory_space<vmem>>) attributes {dimension_semantics = [#tpu.dimension_semantics<parallel>], iteration_bounds = array<i64: 1>, scalar_prefetch = 0 : i64, scratch_operands = 0 : i64, tpu.core_type = #tpu.core_type<tc>, window_params = [{transform_indices = @transform_0, window_bounds = array<i64: 8, 32>}, {pipeline_mode = #tpu.pipeline_mode<synchronous>, transform_indices = @transform_1, window_bounds = array<i64: 32, 128>}, {pipeline_mode = #tpu.pipeline_mode<synchronous>, transform_indices = @transform_2, window_bounds = array<i64: 1, 128>}, {pipeline_mode = #tpu.pipeline_mode<synchronous>, transform_indices = @transform_3, window_bounds = array<i64: 128, 128>}, {pipeline_mode = #tpu.pipeline_mode<synchronous>, transform_indices = @transform_4, window_bounds = array<i64: 1, 128>}, {pipeline_mode = #tpu.pipeline_mode<synchronous>, transform_indices = @transform_5, window_bounds = array<i64: 128, 128>}, {pipeline_mode = #tpu.pipeline_mode<synchronous>, transform_indices = @transform_6, window_bounds = array<i64: 1, 16>}, {transform_indices = @transform_7, window_bounds = array<i64: 8, 16>}]} {
    %c0 = arith.constant 0 : index
    %c0_0 = arith.constant 0 : index
    %0 = vector.load %arg1[%c0, %c0_0] : memref<8x32xf32, #tpu.memory_space<vmem>>, vector<8x32xf32>
    %c0_1 = arith.constant 0 : index
    %c0_2 = arith.constant 0 : index
    %1 = vector.load %arg2[%c0_1, %c0_2] : memref<32x128xf32, #tpu.memory_space<vmem>>, vector<32x128xf32>
    %cst = arith.constant dense<0.000000e+00> : vector<8x128xf32>
    %2 = tpu.matmul %0, %1, %cst {dimension_numbers = #tpu.dot_dimension_numbers<[1], [0], [0], [1], [0, 0, 1, 1], [], []>} : vector<8x32xf32>, vector<32x128xf32>, vector<8x128xf32> -> vector<8x128xf32>
    %c0_3 = arith.constant 0 : index
    %c0_4 = arith.constant 0 : index
    %3 = vector.load %arg3[%c0_3, %c0_4] : memref<1x128xf32, #tpu.memory_space<vmem>>, vector<1x128xf32>
    %4 = vector.broadcast %3 : vector<1x128xf32> to vector<8x128xf32>
    %5 = arith.addf %2, %4 : vector<8x128xf32>
    %cst_5 = arith.constant 0.000000e+00 : f32
    %6 = vector.broadcast %cst_5 : f32 to vector<8x128xf32>
    %7 = arith.maximumf %5, %6 : vector<8x128xf32>
    %c0_6 = arith.constant 0 : index
    %c0_7 = arith.constant 0 : index
    %8 = vector.load %arg4[%c0_6, %c0_7] : memref<128x128xf32, #tpu.memory_space<vmem>>, vector<128x128xf32>
    %cst_8 = arith.constant dense<0.000000e+00> : vector<8x128xf32>
    %9 = tpu.matmul %7, %8, %cst_8 {dimension_numbers = #tpu.dot_dimension_numbers<[1], [0], [0], [1], [0, 0, 1, 1], [], []>} : vector<8x128xf32>, vector<128x128xf32>, vector<8x128xf32> -> vector<8x128xf32>
    %c0_9 = arith.constant 0 : index
    %c0_10 = arith.constant 0 : index
    %10 = vector.load %arg5[%c0_9, %c0_10] : memref<1x128xf32, #tpu.memory_space<vmem>>, vector<1x128xf32>
    %11 = vector.broadcast %10 : vector<1x128xf32> to vector<8x128xf32>
    %12 = arith.addf %9, %11 : vector<8x128xf32>
    %cst_11 = arith.constant 0.000000e+00 : f32
    %13 = vector.broadcast %cst_11 : f32 to vector<8x128xf32>
    %14 = arith.maximumf %12, %13 : vector<8x128xf32>
    %c0_12 = arith.constant 0 : index
    %c0_13 = arith.constant 0 : index
    %15 = vector.load %arg6[%c0_12, %c0_13] : memref<128x128xf32, #tpu.memory_space<vmem>>, vector<128x128xf32>
    %cst_14 = arith.constant dense<0.000000e+00> : vector<8x128xf32>
    %16 = tpu.matmul %14, %15, %cst_14 {dimension_numbers = #tpu.dot_dimension_numbers<[1], [0], [0], [1], [0, 0, 1, 1], [], []>} : vector<8x128xf32>, vector<128x128xf32>, vector<8x128xf32> -> vector<8x128xf32>
    %17 = vector.extract_strided_slice %16 {offsets = [0, 0], sizes = [8, 16], strides = [1, 1]} : vector<8x128xf32> to vector<8x16xf32>
    %c0_15 = arith.constant 0 : index
    %c0_16 = arith.constant 0 : index
    %18 = vector.load %arg7[%c0_15, %c0_16] : memref<1x16xf32, #tpu.memory_space<vmem>>, vector<1x16xf32>
    %19 = vector.broadcast %18 : vector<1x16xf32> to vector<8x16xf32>
    %20 = arith.addf %17, %19 : vector<8x16xf32>
    %c0_17 = arith.constant 0 : index
    %c0_18 = arith.constant 0 : index
    %21 = vector.load %arg8[%c0_17, %c0_18] : memref<8x16xf32, #tpu.memory_space<vmem>>, vector<8x16xf32>
    tpu.vector_store %arg8[%c0_17, %c0_18], %20 {strides = array<i32>} : memref<8x16xf32, #tpu.memory_space<vmem>>, vector<8x16xf32>,
    return
  }
  func.func @transform_0(%arg0: i32) -> (i32, i32) {
    %c0_i32 = arith.constant 0 : i32
    %c0_i32_0 = arith.constant 0 : i32
    return %arg0, %c0_i32 : i32, i32
  }
  func.func @transform_1(%arg0: i32) -> (i32, i32) {
    %c0_i32 = arith.constant 0 : i32
    %c0_i32_0 = arith.constant 0 : i32
    %c0_i32_1 = arith.constant 0 : i32
    return %c0_i32, %c0_i32_0 : i32, i32
  }
  func.func @transform_2(%arg0: i32) -> (i32, i32) {
    %c0_i32 = arith.constant 0 : i32
    %c0_i32_0 = arith.constant 0 : i32
    %c0_i32_1 = arith.constant 0 : i32
    return %c0_i32, %c0_i32_0 : i32, i32
  }
  func.func @transform_3(%arg0: i32) -> (i32, i32) {
    %c0_i32 = arith.constant 0 : i32
    %c0_i32_0 = arith.constant 0 : i32
    %c0_i32_1 = arith.constant 0 : i32
    return %c0_i32, %c0_i32_0 : i32, i32
  }
  func.func @transform_4(%arg0: i32) -> (i32, i32) {
    %c0_i32 = arith.constant 0 : i32
    %c0_i32_0 = arith.constant 0 : i32
    %c0_i32_1 = arith.constant 0 : i32
    return %c0_i32, %c0_i32_0 : i32, i32
  }
  func.func @transform_5(%arg0: i32) -> (i32, i32) {
    %c0_i32 = arith.constant 0 : i32
    %c0_i32_0 = arith.constant 0 : i32
    %c0_i32_1 = arith.constant 0 : i32
    return %c0_i32, %c0_i32_0 : i32, i32
  }
  func.func @transform_6(%arg0: i32) -> (i32, i32) {
    %c0_i32 = arith.constant 0 : i32
    %c0_i32_0 = arith.constant 0 : i32
    %c0_i32_1 = arith.constant 0 : i32
    return %c0_i32, %c0_i32_0 : i32, i32
  }
  func.func @transform_7(%arg0: i32) -> (i32, i32) {
    %c0_i32 = arith.constant 0 : i32
    %c0_i32_0 = arith.constant 0 : i32
    return %arg0, %c0_i32 : i32, i32
  }
}

</mosaic_0001>

<llo_original>
// kernel: simple_network_forward.1
$region0: #{simple_network_forward.1}
  #allocation0 [shape = 'u32[]', space=smem, size = 0x4, offset = 0x4, fixed_abs, tag = 'smem constant byte address 0x4 - core index']
  #allocation1 [shape = 'u32[144,128]{1,0:T(1,128)}', space=vmem, size = 0x12000, scoped, tag = 'internal scratch']
  %s0 = inlined_call_operand.vmem [shape: f32[8,32], index: 0, kind: input, shape index: {}]
  %s1 = inlined_call_operand.vmem [shape: f32[32,128], index: 1, kind: input, shape index: {}]
  %s2 = inlined_call_operand.vmem [shape: f32[1,128], index: 2, kind: input, shape index: {}]
  %s3 = inlined_call_operand.vmem [shape: f32[128,128], index: 3, kind: input, shape index: {}]
  %s4 = inlined_call_operand.vmem [shape: f32[1,128], index: 4, kind: input, shape index: {}]
  %s5 = inlined_call_operand.vmem [shape: f32[128,128], index: 5, kind: input, shape index: {}]
  %s6 = inlined_call_operand.vmem [shape: f32[1,16], index: 6, kind: input, shape index: {}]
  %s7 = inlined_call_operand.hbm [shape: f32[8,16], index: 7, kind: output, shape index: {}]
  %s8 = sld [smem:[#allocation0]]
  $region38: #{simple_network_forward.1} parent=0
    _
  %s10 = ssub.s32 1, %s8
  %s11 = scalar_select 0, %s10, %s8
  $region1: #{simple_network_forward.1} parent=0
    #allocation2 [shape = 'u8[4096]{0}', space=vmem, size = 0x1000, scoped, tag = 'output window, operand 0, single buffered']
    #allocation3 [shape = 's32[1]{0}', space=sflag, size = 0x4, scoped, tag = 'scoped memory for simple_network_forward.1']
    %12 = vsyncpa [#allocation3], 0
    // Predicated region
    $region2: #{simple_network_forward.1} parent=1 // pred_check
      _
    $region3: #{simple_network_forward.1} parent=1 // pred_check_branch
      %14 = sbr.rel (0) target = $region5
    $region4: #{simple_network_forward.1} parent=1 // pred_region
      _
    $region5: #{simple_network_forward.1} parent=1 // pred_fallthru
      _
    // Predicated region
    $region6: #{simple_network_forward.1} parent=1 // pred_check
      _
    $region7: #{simple_network_forward.1} parent=1 // pred_check_branch
      %16 = sbr.rel (0) target = $region9
    $region8: #{simple_network_forward.1} parent=1 // pred_region
      _
    $region9: #{simple_network_forward.1} parent=1 // pred_fallthru
      _
    // Predicated region
    $region10: #{simple_network_forward.1} parent=1 // pred_check
      _
    $region11: #{simple_network_forward.1} parent=1 // pred_check_branch
      %18 = sbr.rel (0) target = $region13
    $region12: #{simple_network_forward.1} parent=1 // pred_region
      _
    $region13: #{simple_network_forward.1} parent=1 // pred_fallthru
      _
    // Predicated region
    $region14: #{simple_network_forward.1} parent=1 // pred_check
      _
    $region15: #{simple_network_forward.1} parent=1 // pred_check_branch
      %20 = sbr.rel (0) target = $region17
    $region16: #{simple_network_forward.1} parent=1 // pred_region
      _
    $region17: #{simple_network_forward.1} parent=1 // pred_fallthru
      _
    // Predicated region
    $region18: #{simple_network_forward.1} parent=1 // pred_check
      _
    $region19: #{simple_network_forward.1} parent=1 // pred_check_branch
      %22 = sbr.rel (0) target = $region21
    $region20: #{simple_network_forward.1} parent=1 // pred_region
      _
    $region21: #{simple_network_forward.1} parent=1 // pred_fallthru
      _
    // Predicated region
    $region22: #{simple_network_forward.1} parent=1 // pred_check
      _
    $region23: #{simple_network_forward.1} parent=1 // pred_check_branch
      %24 = sbr.rel (0) target = $region25
    $region24: #{simple_network_forward.1} parent=1 // pred_region
      _
    $region25: #{simple_network_forward.1} parent=1 // pred_fallthru
      _
    // Predicated region
    $region26: #{simple_network_forward.1} parent=1 // pred_check
      _
    $region27: #{simple_network_forward.1} parent=1 // pred_check_branch
      %26 = sbr.rel (0) target = $region29
    $region28: #{simple_network_forward.1} parent=1 // pred_region
      _
    $region29: #{simple_network_forward.1} parent=1 // pred_fallthru
      _
    %v27 = vld [vmem:[%s0] sm:$0xff]
    %v28 = vld [vmem:[%s1] sm:$0xff]
    %v29 = vld [vmem:[%s1 + $0x8] sm:$0xff]
    %v30 = vld [vmem:[%s1 + $0x10] sm:$0xff]
    %v31 = vld [vmem:[%s1 + $0x18] sm:$0xff]
    %v32 = vld [vmem:[%s2] sm:$0x1]
    %v34 = vlaneseq
    %v35 = vshrl.u32 %v34, 7
    %v36 = vsub.s32 0, %v35
    %v37 = vrot.slane %v32, %v36
    %vm39 = vcmask 261120
    %v41 = vsel %vm39, %v27, 0
    %43 = vmatprep.subr.mxu0 0.0
    %44 = vmatpush1.msra.mxu0 %v28
    %45 = vmatprep.subr.mxu0 0.0
    %46 = vmatpush1.msra.mxu0 %v29
    %47 = vmatprep.subr.mxu0 0.0
    %48 = vmatpush1.msra.mxu0 %v30
    %49 = vmatprep.subr.mxu0 0.0
    %50 = vmatpush1.msra.mxu0 %v31
    %51 = vmatprep.subr.mxu0 0.0
    %52 = vmatpush1.msra.mxu0 0.0
    %53 = vmatprep.subr.mxu0 0.0
    %54 = vmatpush1.msra.mxu0 0.0
    %55 = vmatprep.subr.mxu0 0.0
    %56 = vmatpush1.msra.mxu0 0.0
    %57 = vmatprep.subr.mxu0 0.0
    %58 = vmatpush1.msra.mxu0 0.0
    %59 = vmatprep.subr.mxu0 0.0
    %60 = vmatpush1.msra.mxu0 0.0
    %61 = vmatprep.subr.mxu0 0.0
    %62 = vmatpush1.msra.mxu0 0.0
    %63 = vmatprep.subr.mxu0 0.0
    %64 = vmatpush1.msra.mxu0 0.0
    %65 = vmatprep.subr.mxu0 0.0
    %66 = vmatpush1.msra.mxu0 0.0
    %67 = vmatprep.subr.mxu0 0.0
    %68 = vmatpush1.msra.mxu0 0.0
    %69 = vmatprep.subr.mxu0 0.0
    %70 = vmatpush1.msra.mxu0 0.0
    %71 = vmatprep.subr.mxu0 0.0
    %72 = vmatpush1.msra.mxu0 0.0
    %73 = vmatprep.subr.mxu0 0.0
    %74 = vmatpush1.msra.mxu0 0.0
    %75 = vmatprep.subr.mxu0 0.0
    %76 = vmatpush1.msra.mxu0 0.0
    %77 = vmatprep.subr.mxu0 0.0
    %78 = vmatpush1.msra.mxu0 0.0
    %79 = vmatprep.subr.mxu0 0.0
    %80 = vmatpush1.msra.mxu0 0.0
    %81 = vmatprep.subr.mxu0 0.0
    %82 = vmatpush1.msra.mxu0 0.0
    %83 = vmatprep.subr.mxu0 0.0
    %84 = vmatpush1.msra.mxu0 0.0
    %85 = vmatprep.subr.mxu0 0.0
    %86 = vmatpush1.msra.mxu0 0.0
    %87 = vmatprep.subr.mxu0 0.0
    %88 = vmatpush1.msra.mxu0 0.0
    %89 = vmatprep.subr.mxu0 0.0
    %90 = vmatpush1.msra.mxu0 0.0
    %91 = vmatprep.subr.mxu0 0.0
    %92 = vmatpush1.msra.mxu0 0.0
    %93 = vmatprep.subr.mxu0 0.0
    %94 = vmatpush1.msra.mxu0 0.0
    %95 = vmatprep.subr.mxu0 0.0
    %96 = vmatpush1.msra.mxu0 0.0
    %97 = vmatprep.subr.mxu0 0.0
    %98 = vmatpush1.msra.mxu0 0.0
    %99 = vmatprep.subr.mxu0 0.0
    %100 = vmatpush1.msra.mxu0 0.0
    %101 = vmatprep.subr.mxu0 0.0
    %102 = vmatpush1.msra.mxu0 0.0
    %103 = vmatprep.subr.mxu0 0.0
    %104 = vmatpush1.msra.mxu0 0.0
    %105 = vmatprep.subr.mxu0 0.0
    %106 = vmatpush1.msra.mxu0 0.0
    %107 = vmatprep.mubr.f32.mxu0 0.0
    %108 = vmatmul.mubr.f32.gmra.mrb[0].mxu0 %v41
    %v109 = vpop.f32.mrb[0].mxu0
    %v110 = vadd.f32 %v37, %v109
    %v111 = vpop.f32.mrb[0].mxu0
    %112 = vdwg.mxu0
    %v113 = vmax.f32 %v110, 0.0
    %v114 = vld [vmem:[%s3] sm:$0xff]
    %v115 = vld [vmem:[%s3 + $0x8] sm:$0xff]
    %v116 = vld [vmem:[%s3 + $0x10] sm:$0xff]
    %v117 = vld [vmem:[%s3 + $0x18] sm:$0xff]
    %v118 = vld [vmem:[%s3 + $0x20] sm:$0xff]
    %v119 = vld [vmem:[%s3 + $0x28] sm:$0xff]
    %v120 = vld [vmem:[%s3 + $0x30] sm:$0xff]
    %v121 = vld [vmem:[%s3 + $0x38] sm:$0xff]
    %v122 = vld [vmem:[%s3 + $0x40] sm:$0xff]
    %v123 = vld [vmem:[%s3 + $0x48] sm:$0xff]
    %v124 = vld [vmem:[%s3 + $0x50] sm:$0xff]
    %v125 = vld [vmem:[%s3 + $0x58] sm:$0xff]
    %v126 = vld [vmem:[%s3 + $0x60] sm:$0xff]
    %v127 = vld [vmem:[%s3 + $0x68] sm:$0xff]
    %v128 = vld [vmem:[%s3 + $0x70] sm:$0xff]
    %v129 = vld [vmem:[%s3 + $0x78] sm:$0xff]
    %v130 = vld [vmem:[%s4] sm:$0x1]
    %v132 = vlaneseq
    %v133 = vshrl.u32 %v132, 7
    %v134 = vsub.s32 0, %v133
    %v135 = vrot.slane %v130, %v134
    %137 = vmatprep.subr.mxu0 0.0
    %138 = vmatpush1.msra.mxu0 %v114
    %139 = vmatprep.subr.mxu0 0.0
    %140 = vmatpush1.msra.mxu0 %v115
    %141 = vmatprep.subr.mxu0 0.0
    %142 = vmatpush1.msra.mxu0 %v116
    %143 = vmatprep.subr.mxu0 0.0
    %144 = vmatpush1.msra.mxu0 %v117
    %145 = vmatprep.subr.mxu0 0.0
    %146 = vmatpush1.msra.mxu0 %v118
    %147 = vmatprep.subr.mxu0 0.0
    %148 = vmatpush1.msra.mxu0 %v119
    %149 = vmatprep.subr.mxu0 0.0
    %150 = vmatpush1.msra.mxu0 %v120
    %151 = vmatprep.subr.mxu0 0.0
    %152 = vmatpush1.msra.mxu0 %v121
    %153 = vmatprep.subr.mxu0 0.0
    %154 = vmatpush1.msra.mxu0 %v122
    %155 = vmatprep.subr.mxu0 0.0
    %156 = vmatpush1.msra.mxu0 %v123
    %157 = vmatprep.subr.mxu0 0.0
    %158 = vmatpush1.msra.mxu0 %v124
    %159 = vmatprep.subr.mxu0 0.0
    %160 = vmatpush1.msra.mxu0 %v125
    %161 = vmatprep.subr.mxu0 0.0
    %162 = vmatpush1.msra.mxu0 %v126
    %163 = vmatprep.subr.mxu0 0.0
    %164 = vmatpush1.msra.mxu0 %v127
    %165 = vmatprep.subr.mxu0 0.0
    %166 = vmatpush1.msra.mxu0 %v128
    %167 = vmatprep.subr.mxu0 0.0
    %168 = vmatpush1.msra.mxu0 %v129
    %169 = vmatprep.subr.mxu0 0.0
    %170 = vmatpush1.msra.mxu0 0.0
    %171 = vmatprep.subr.mxu0 0.0
    %172 = vmatpush1.msra.mxu0 0.0
    %173 = vmatprep.subr.mxu0 0.0
    %174 = vmatpush1.msra.mxu0 0.0
    %175 = vmatprep.subr.mxu0 0.0
    %176 = vmatpush1.msra.mxu0 0.0
    %177 = vmatprep.subr.mxu0 0.0
    %178 = vmatpush1.msra.mxu0 0.0
    %179 = vmatprep.subr.mxu0 0.0
    %180 = vmatpush1.msra.mxu0 0.0
    %181 = vmatprep.subr.mxu0 0.0
    %182 = vmatpush1.msra.mxu0 0.0
    %183 = vmatprep.subr.mxu0 0.0
    %184 = vmatpush1.msra.mxu0 0.0
    %185 = vmatprep.subr.mxu0 0.0
    %186 = vmatpush1.msra.mxu0 0.0
    %187 = vmatprep.subr.mxu0 0.0
    %188 = vmatpush1.msra.mxu0 0.0
    %189 = vmatprep.subr.mxu0 0.0
    %190 = vmatpush1.msra.mxu0 0.0
    %191 = vmatprep.subr.mxu0 0.0
    %192 = vmatpush1.msra.mxu0 0.0
    %193 = vmatprep.subr.mxu0 0.0
    %194 = vmatpush1.msra.mxu0 0.0
    %195 = vmatprep.subr.mxu0 0.0
    %196 = vmatpush1.msra.mxu0 0.0
    %197 = vmatprep.subr.mxu0 0.0
    %198 = vmatpush1.msra.mxu0 0.0
    %199 = vmatprep.subr.mxu0 0.0
    %200 = vmatpush1.msra.mxu0 0.0
    %201 = vmatprep.mubr.f32.mxu0 0.0
    %202 = vmatmul.mubr.f32.gmra.mrb[0].mxu0 %v113
    %v203 = vpop.f32.mrb[0].mxu0
    %v204 = vadd.f32 %v135, %v203
    %v205 = vpop.f32.mrb[0].mxu0
    %206 = vdwg.mxu0
    %v207 = vmax.f32 %v204, 0.0
    %v208 = vld [vmem:[%s5] sm:$0xff]
    %v209 = vld [vmem:[%s5 + $0x8] sm:$0xff]
    %v210 = vld [vmem:[%s5 + $0x10] sm:$0xff]
    %v211 = vld [vmem:[%s5 + $0x18] sm:$0xff]
    %v212 = vld [vmem:[%s5 + $0x20] sm:$0xff]
    %v213 = vld [vmem:[%s5 + $0x28] sm:$0xff]
    %v214 = vld [vmem:[%s5 + $0x30] sm:$0xff]
    %v215 = vld [vmem:[%s5 + $0x38] sm:$0xff]
    %v216 = vld [vmem:[%s5 + $0x40] sm:$0xff]
    %v217 = vld [vmem:[%s5 + $0x48] sm:$0xff]
    %v218 = vld [vmem:[%s5 + $0x50] sm:$0xff]
    %v219 = vld [vmem:[%s5 + $0x58] sm:$0xff]
    %v220 = vld [vmem:[%s5 + $0x60] sm:$0xff]
    %v221 = vld [vmem:[%s5 + $0x68] sm:$0xff]
    %v222 = vld [vmem:[%s5 + $0x70] sm:$0xff]
    %v223 = vld [vmem:[%s5 + $0x78] sm:$0xff]
    %224 = vmatprep.subr.mxu0 0.0
    %225 = vmatpush1.msra.mxu0 %v208
    %226 = vmatprep.subr.mxu0 0.0
    %227 = vmatpush1.msra.mxu0 %v209
    %228 = vmatprep.subr.mxu0 0.0
    %229 = vmatpush1.msra.mxu0 %v210
    %230 = vmatprep.subr.mxu0 0.0
    %231 = vmatpush1.msra.mxu0 %v211
    %232 = vmatprep.subr.mxu0 0.0
    %233 = vmatpush1.msra.mxu0 %v212
    %234 = vmatprep.subr.mxu0 0.0
    %235 = vmatpush1.msra.mxu0 %v213
    %236 = vmatprep.subr.mxu0 0.0
    %237 = vmatpush1.msra.mxu0 %v214
    %238 = vmatprep.subr.mxu0 0.0
    %239 = vmatpush1.msra.mxu0 %v215
    %240 = vmatprep.subr.mxu0 0.0
    %241 = vmatpush1.msra.mxu0 %v216
    %242 = vmatprep.subr.mxu0 0.0
    %243 = vmatpush1.msra.mxu0 %v217
    %244 = vmatprep.subr.mxu0 0.0
    %245 = vmatpush1.msra.mxu0 %v218
    %246 = vmatprep.subr.mxu0 0.0
    %247 = vmatpush1.msra.mxu0 %v219
    %248 = vmatprep.subr.mxu0 0.0
    %249 = vmatpush1.msra.mxu0 %v220
    %250 = vmatprep.subr.mxu0 0.0
    %251 = vmatpush1.msra.mxu0 %v221
    %252 = vmatprep.subr.mxu0 0.0
    %253 = vmatpush1.msra.mxu0 %v222
    %254 = vmatprep.subr.mxu0 0.0
    %255 = vmatpush1.msra.mxu0 %v223
    %256 = vmatprep.subr.mxu0 0.0
    %257 = vmatpush1.msra.mxu0 0.0
    %258 = vmatprep.subr.mxu0 0.0
    %259 = vmatpush1.msra.mxu0 0.0
    %260 = vmatprep.subr.mxu0 0.0
    %261 = vmatpush1.msra.mxu0 0.0
    %262 = vmatprep.subr.mxu0 0.0
    %263 = vmatpush1.msra.mxu0 0.0
    %264 = vmatprep.subr.mxu0 0.0
    %265 = vmatpush1.msra.mxu0 0.0
    %266 = vmatprep.subr.mxu0 0.0
    %267 = vmatpush1.msra.mxu0 0.0
    %268 = vmatprep.subr.mxu0 0.0
    %269 = vmatpush1.msra.mxu0 0.0
    %270 = vmatprep.subr.mxu0 0.0
    %271 = vmatpush1.msra.mxu0 0.0
    %272 = vmatprep.subr.mxu0 0.0
    %273 = vmatpush1.msra.mxu0 0.0
    %274 = vmatprep.subr.mxu0 0.0
    %275 = vmatpush1.msra.mxu0 0.0
    %276 = vmatprep.subr.mxu0 0.0
    %277 = vmatpush1.msra.mxu0 0.0
    %278 = vmatprep.subr.mxu0 0.0
    %279 = vmatpush1.msra.mxu0 0.0
    %280 = vmatprep.subr.mxu0 0.0
    %281 = vmatpush1.msra.mxu0 0.0
    %282 = vmatprep.subr.mxu0 0.0
    %283 = vmatpush1.msra.mxu0 0.0
    %284 = vmatprep.subr.mxu0 0.0
    %285 = vmatpush1.msra.mxu0 0.0
    %286 = vmatprep.subr.mxu0 0.0
    %287 = vmatpush1.msra.mxu0 0.0
    %288 = vmatprep.mubr.f32.mxu0 0.0
    %289 = vmatmul.mubr.f32.gmra.mrb[0].mxu0 %v207
    %v290 = vpop.f32.mrb[0].mxu0
    %v291 = vadd.f32 0.0, %v290
    %v292 = vpop.f32.mrb[0].mxu0
    %293 = vdwg.mxu0
    %v294 = vld [vmem:[%s6] sm:$0x1]
    %v296 = vlaneseq
    %v297 = vshrl.u32 %v296, 7
    %v298 = vsub.s32 0, %v297
    %v299 = vrot.slane %v294, %v298
    %v301 = vadd.f32 %v291, %v299
    %vm302 = vcmask 130048
    %303 = vst.msk [vmem:[#allocation2] sm:$0xff] %vm302, %v301
    // Predicated region
    $region30: #{simple_network_forward.1} parent=1 // pred_check
      _
    $region31: #{simple_network_forward.1} parent=1 // pred_check_branch
      %305 = sbr.rel (0) target = $region33
    $region32: #{simple_network_forward.1} parent=1 // pred_region
      %s307 = ssub.s32 128, 128
      %308 = vsyncadd [#allocation3], %s307
      %s310 = sshll.u32 [#allocation2], 4
      %s311 = int_to_ptr.vmem [resolvable:$true] %s310
      %313 = dma.vmem_to_hbm [thread:$0]  %s311, 128, %s7, [#allocation3]
    $region33: #{simple_network_forward.1} parent=1 // pred_fallthru
      _
    // Predicated region
    $region34: #{simple_network_forward.1} parent=1 // pred_check
      _
    $region35: #{simple_network_forward.1} parent=1 // pred_check_branch
      %315 = sbr.rel (0) target = $region37
    $region36: #{simple_network_forward.1} parent=1 // pred_region
      %316 = dma.done [#allocation3], 128
    $region37: #{simple_network_forward.1} parent=1 // pred_fallthru
      _
    %317 = vsyncpa [#allocation3], 1

</llo_original>
